<compile_context>
chip_gen: v6e
topology: v6e:2x2x1
jax: 0.10.0
libtpu: 0.0.40
codegen_flags: <defaults>
</compile_context>

<pallas_src>
import jax
import jax.numpy as jnp
from jax.experimental import pallas as pl
from jax.experimental.pallas import tpu as pltpu  # noqa: F401  (TPU backend)


# ---------------------------------------------------------------------------
# Kernels
# ---------------------------------------------------------------------------

def _enc_proj_kernel(enc_ref, we_ref, out_ref):
    # enc_ref : (S*B, E2) bf16   row r = s*B + b (free row-major view of (S,B,E2))
    # we_ref  : (E2, D)   bf16   attn weight slice acting on encoder outputs
    # out_ref : (S*B, D)  f32    e_proj[r] = We^T . enc[r]
    out_ref[...] = jnp.dot(enc_ref[...], we_ref[...],
                           preferred_element_type=jnp.float32)


def _attn_step_kernel(hid_ref, eproj_ref, wh_ref, b_ref, fcw_ref, out_ref):
    # hid_ref   : (B, D)     bf16  decoder hidden state
    # eproj_ref : (S, B, D)  f32   precomputed encoder projection (s-major)
    # wh_ref    : (D, D)     bf16  attn weight slice acting on `hidden`
    # b_ref     : (1, D)     f32   attn bias
    # fcw_ref   : (1, D)     f32   fc weight (no bias)
    # out_ref   : (S, B, 1)  f32   softmax attention weights, softmax over S (axis 0)
    S = eproj_ref.shape[0]

    # (1) Hidden projection + bias, computed ONCE per step for the whole batch (M=B).
    h_proj = jnp.dot(hid_ref[...], wh_ref[...],
                     preferred_element_type=jnp.float32) + b_ref[...]        # (B, D) f32

    # (2) energy = tanh(e_proj + h_proj): h_proj broadcasts over the leading S
    #     dim for free (vreg-array replication; no one-hot matmul, no relayout).
    energy = jnp.tanh(eproj_ref[...] + h_proj)                                # (S, B, D) f32

    # (3) fc score: VPU multiply + lane (XLU) reduce -- keeps the MXU free and the
    #     result lands directly in (S, B) orientation (no un-interleave needed).
    v = jnp.sum(energy * fcw_ref[...], axis=-1, keepdims=True)                # (S, B, 1) f32

    # (4) Softmax over the sequence axis (leading dim). S is tiny and static, so
    #     the max/sum are unrolled into elementwise ops on single vregs -- robust
    #     lowering, negligible cost. Exact division => rows sum to 1.
    m = v[0:1]
    for s in range(1, S):
        m = jnp.maximum(m, v[s:s + 1])                                        # (1, B, 1)
    e = jnp.exp(v - m)                                                        # (S, B, 1)
    den = e[0:1]
    for s in range(1, S):
        den = den + e[s:s + 1]                                                # (1, B, 1)
    out_ref[...] = (e / den).astype(out_ref.dtype)


# ---------------------------------------------------------------------------
# Host-side wrappers (decode-loop friendly structure)
# ---------------------------------------------------------------------------

def prepare_attention_params(attn_w, attn_b, fc_w, dec_hid_dim,
                             matmul_dtype=jnp.bfloat16):
    """One-time weight prep -- hoist OUT of the per-decode-step path.

    attn_w: (D, 2E + D)  PyTorch nn.Linear weight layout (out, in)
    attn_b: (D,)
    fc_w:   (1, D)
    Returns (wh, we, b2, fcw) reused by every attention step.
    """
    D = dec_hid_dim
    # torch.cat((hidden, enc), dim=2): first D input features act on `hidden`,
    # the remaining 2E act on the encoder outputs.
    wh = jnp.transpose(attn_w[:, :D]).astype(matmul_dtype)     # (D, D)   bf16
    we = jnp.transpose(attn_w[:, D:]).astype(matmul_dtype)     # (E2, D)  bf16
    b2 = attn_b.reshape(1, D).astype(jnp.float32)              # (1, D)   f32
    fcw = fc_w.reshape(1, D).astype(jnp.float32)               # (1, D)   f32
    return wh, we, b2, fcw


def precompute_encoder_projection(encoder_outputs, we, matmul_dtype=jnp.bfloat16):
    """One-time per source sequence: e_proj[s, b, :] = We^T . enc[s, b, :].

    Loop-invariant across decoder steps -- compute once, reuse for every
    attention_step. encoder_outputs: (S, B, 2E) in the PyTorch axis convention.
    Returns (S, B, D) float32.
    """
    S, B, E2 = encoder_outputs.shape
    D = we.shape[1]
    # NO transpose of encoder_outputs: merge (S, B) into the matmul M dimension
    # with a FREE row-major reshape (row r = s*B + b).
    enc2d = encoder_outputs.reshape(S * B, E2).astype(matmul_dtype)
    e_proj = pl.pallas_call(
        _enc_proj_kernel,
        out_shape=jax.ShapeDtypeStruct((S * B, D), jnp.float32),
    )(enc2d, we)
    return e_proj.reshape(S, B, D)                 # free row-major reshape


def attention_step(hidden, e_proj, wh, b2, fcw, matmul_dtype=jnp.bfloat16):
    """Per-decode-step attention.

    hidden: (B, D); e_proj: (S, B, D) from precompute_encoder_projection.
    Returns (B, S) softmax attention weights (float32).
    """
    B, D = hidden.shape
    S = e_proj.shape[0]
    hid = hidden.astype(matmul_dtype)
    out_sb1 = pl.pallas_call(
        _attn_step_kernel,
        out_shape=jax.ShapeDtypeStruct((S, B, 1), jnp.float32),
    )(hid, e_proj, wh, b2, fcw)
    # (S, B, 1) -> (B, S): a 16-float layout fix-up in the wrapper (pure plumbing).
    return jnp.transpose(out_sb1[:, :, 0], (1, 0))


def attention_forward(hidden, encoder_outputs, attn_w, attn_b, fc_w,
                      matmul_dtype=jnp.bfloat16):
    """Full forward matching the PyTorch module for a single decode step.

    In a real decode loop, call prepare_attention_params once per model and
    precompute_encoder_projection once per source sequence; only attention_step
    runs per decoder step.
    """
    B, D = hidden.shape
    wh, we, b2, fcw = prepare_attention_params(attn_w, attn_b, fc_w, D, matmul_dtype)
    e_proj = precompute_encoder_projection(encoder_outputs, we, matmul_dtype)
    return attention_step(hidden, e_proj, wh, b2, fcw, matmul_dtype)


# ---------------------------------------------------------------------------
# Pure-JAX reference (replicates the PyTorch forward exactly, f32)
# ---------------------------------------------------------------------------

def reference_forward(hidden, encoder_outputs, attn_w, attn_b, fc_w):
    S = encoder_outputs.shape[0]
    hid_rep = jnp.repeat(hidden[:, None, :], S, axis=1)        # (B, S, D)
    enc = jnp.transpose(encoder_outputs, (1, 0, 2))            # (B, S, 2E)
    energy = jnp.concatenate([hid_rep, enc], axis=2)           # (B, S, 2E+D)
    energy = jnp.tanh(energy @ attn_w.T + attn_b)              # (B, S, D)
    attention = (energy @ fc_w.T)[..., 0]                      # (B, S)
    return jax.nn.softmax(attention, axis=1)


if __name__ == "__main__":
    enc_hid_dim = 16
    dec_hid_dim = 32
    batch = 2
    seq_len = 8
    in_dim = 2 * enc_hid_dim + dec_hid_dim                     # 64

    key = jax.random.PRNGKey(0)
    k0, k1, k2, k3, k4 = jax.random.split(key, 5)

    # Deterministic parameter init (PyTorch nn.Linear-style uniform bounds).
    bound_attn = 1.0 / jnp.sqrt(in_dim)
    attn_w = jax.random.uniform(k0, (dec_hid_dim, in_dim), jnp.float32,
                                -bound_attn, bound_attn)
    attn_b = jax.random.uniform(k1, (dec_hid_dim,), jnp.float32,
                                -bound_attn, bound_attn)
    bound_fc = 1.0 / jnp.sqrt(dec_hid_dim)
    fc_w = jax.random.uniform(k2, (1, dec_hid_dim), jnp.float32,
                              -bound_fc, bound_fc)

    # Example inputs (PyTorch axis conventions).
    hidden = jax.random.normal(k3, (batch, dec_hid_dim), jnp.float32)
    encoder_outputs = jax.random.normal(
        k4, (seq_len, batch, 2 * enc_hid_dim), jnp.float32)

    # Fused single-call path (prep + encoder precompute + step).
    attn_fn = jax.jit(attention_forward, static_argnames=("matmul_dtype",))
    out = jax.block_until_ready(attn_fn(hidden, encoder_outputs, attn_w, attn_b, fc_w))

    ref = reference_forward(hidden, encoder_outputs, attn_w, attn_b, fc_w)
    assert out.shape == (batch, seq_len)
    # bf16 matmul inputs => compare at a few 1e-3 absolute.
    assert jnp.allclose(out, ref, atol=5e-3, rtol=0), "mismatch vs reference"
    # Exact-division softmax: rows sum to 1 tightly.
    assert jnp.allclose(jnp.sum(out, axis=1), 1.0, atol=1e-4)

    # Decode-loop structure: params + encoder projection computed once, the
    # per-step kernel reused; verify it matches the fused path.
    wh, we, b2, fcw = prepare_attention_params(attn_w, attn_b, fc_w, dec_hid_dim)
    e_proj = jax.jit(precompute_encoder_projection)(encoder_outputs, we)
    step_fn = jax.jit(attention_step)
    out_step = jax.block_until_ready(step_fn(hidden, e_proj, wh, b2, fcw))
    assert jnp.allclose(out_step, out, atol=1e-5), "split path mismatch"

    print("KERNEL_OK")
</pallas_src>

<mosaic_0001>
module attributes {stable_mosaic.version = 11 : i64} {
  func.func @_enc_proj_kernel(%arg0: memref<16x32xbf16, #tpu.memory_space<vmem>>, %arg1: memref<32x32xbf16, #tpu.memory_space<vmem>>, %arg2: memref<16x32xf32, #tpu.memory_space<vmem>>) attributes {dimension_semantics = [], scalar_prefetch = 0 : i64, scratch_operands = 0 : i64, tpu.core_type = #tpu.core_type<tc>} {
    %c0 = arith.constant 0 : index
    %c0_0 = arith.constant 0 : index
    %0 = vector.load %arg0[%c0, %c0_0] : memref<16x32xbf16, #tpu.memory_space<vmem>>, vector<16x32xbf16>
    %c0_1 = arith.constant 0 : index
    %c0_2 = arith.constant 0 : index
    %1 = vector.load %arg1[%c0_1, %c0_2] : memref<32x32xbf16, #tpu.memory_space<vmem>>, vector<32x32xbf16>
    %cst = arith.constant dense<0.000000e+00> : vector<16x32xf32>
    %2 = tpu.matmul %0, %1, %cst {dimension_numbers = #tpu.dot_dimension_numbers<[1], [0], [0], [1], [0, 0, 1, 1], [], []>} : vector<16x32xbf16>, vector<32x32xbf16>, vector<16x32xf32> -> vector<16x32xf32>
    %c0_3 = arith.constant 0 : index
    %c0_4 = arith.constant 0 : index
    %3 = vector.load %arg2[%c0_3, %c0_4] : memref<16x32xf32, #tpu.memory_space<vmem>>, vector<16x32xf32>
    tpu.vector_store %arg2[%c0_3, %c0_4], %2 {strides = array<i32>} : memref<16x32xf32, #tpu.memory_space<vmem>>, vector<16x32xf32>,
    return
  }
}

module attributes {stable_mosaic.version = 11 : i64} {
  func.func @_attn_step_kernel(%arg0: memref<2x32xbf16, #tpu.memory_space<vmem>>, %arg1: memref<8x2x32xf32, #tpu.memory_space<vmem>>, %arg2: memref<32x32xbf16, #tpu.memory_space<vmem>>, %arg3: memref<1x32xf32, #tpu.memory_space<vmem>>, %arg4: memref<1x32xf32, #tpu.memory_space<vmem>>, %arg5: memref<8x2x1xf32, #tpu.memory_space<vmem>>) attributes {dimension_semantics = [], scalar_prefetch = 0 : i64, scratch_operands = 0 : i64, tpu.core_type = #tpu.core_type<tc>} {
    %c0 = arith.constant 0 : index
    %c0_0 = arith.constant 0 : index
    %0 = vector.load %arg0[%c0, %c0_0] : memref<2x32xbf16, #tpu.memory_space<vmem>>, vector<2x32xbf16>
    %c0_1 = arith.constant 0 : index
    %c0_2 = arith.constant 0 : index
    %1 = vector.load %arg2[%c0_1, %c0_2] : memref<32x32xbf16, #tpu.memory_space<vmem>>, vector<32x32xbf16>
    %cst = arith.constant dense<0.000000e+00> : vector<2x32xf32>
    %2 = tpu.matmul %0, %1, %cst {dimension_numbers = #tpu.dot_dimension_numbers<[1], [0], [0], [1], [0, 0, 1, 1], [], []>} : vector<2x32xbf16>, vector<32x32xbf16>, vector<2x32xf32> -> vector<2x32xf32>
    %c0_3 = arith.constant 0 : index
    %c0_4 = arith.constant 0 : index
    %3 = vector.load %arg3[%c0_3, %c0_4] : memref<1x32xf32, #tpu.memory_space<vmem>>, vector<1x32xf32>
    %4 = vector.broadcast %3 : vector<1x32xf32> to vector<2x32xf32>
    %5 = arith.addf %2, %4 : vector<2x32xf32>
    %c0_5 = arith.constant 0 : index
    %c0_6 = arith.constant 0 : index
    %c0_7 = arith.constant 0 : index
    %6 = vector.load %arg1[%c0_5, %c0_6, %c0_7] : memref<8x2x32xf32, #tpu.memory_space<vmem>>, vector<8x2x32xf32>
    %7 = vector.shape_cast %5 : vector<2x32xf32> to vector<1x2x32xf32>
    %8 = vector.broadcast %7 : vector<1x2x32xf32> to vector<8x2x32xf32>
    %9 = arith.addf %6, %8 : vector<8x2x32xf32>
    %10 = math.tanh %9 : vector<8x2x32xf32>
    %c0_8 = arith.constant 0 : index
    %c0_9 = arith.constant 0 : index
    %11 = vector.load %arg4[%c0_8, %c0_9] : memref<1x32xf32, #tpu.memory_space<vmem>>, vector<1x32xf32>
    %12 = vector.shape_cast %11 : vector<1x32xf32> to vector<1x1x32xf32>
    %13 = vector.broadcast %12 : vector<1x1x32xf32> to vector<8x2x32xf32>
    %14 = arith.mulf %10, %13 : vector<8x2x32xf32>
    %cst_10 = arith.constant dense<0.000000e+00> : vector<8x2xf32>
    %15 = vector.multi_reduction <add>, %14, %cst_10 [2] : vector<8x2x32xf32> to vector<8x2xf32>
    %16 = vector.shape_cast %15 : vector<8x2xf32> to vector<8x2x1xf32>
    %17 = vector.extract_strided_slice %16 {offsets = [0, 0, 0], sizes = [1, 2, 1], strides = [1, 1, 1]} : vector<8x2x1xf32> to vector<1x2x1xf32>
    %18 = vector.extract_strided_slice %16 {offsets = [1, 0, 0], sizes = [1, 2, 1], strides = [1, 1, 1]} : vector<8x2x1xf32> to vector<1x2x1xf32>
    %19 = arith.maximumf %17, %18 : vector<1x2x1xf32>
    %20 = vector.extract_strided_slice %16 {offsets = [2, 0, 0], sizes = [1, 2, 1], strides = [1, 1, 1]} : vector<8x2x1xf32> to vector<1x2x1xf32>
    %21 = arith.maximumf %19, %20 : vector<1x2x1xf32>
    %22 = vector.extract_strided_slice %16 {offsets = [3, 0, 0], sizes = [1, 2, 1], strides = [1, 1, 1]} : vector<8x2x1xf32> to vector<1x2x1xf32>
    %23 = arith.maximumf %21, %22 : vector<1x2x1xf32>
    %24 = vector.extract_strided_slice %16 {offsets = [4, 0, 0], sizes = [1, 2, 1], strides = [1, 1, 1]} : vector<8x2x1xf32> to vector<1x2x1xf32>
    %25 = arith.maximumf %23, %24 : vector<1x2x1xf32>
    %26 = vector.extract_strided_slice %16 {offsets = [5, 0, 0], sizes = [1, 2, 1], strides = [1, 1, 1]} : vector<8x2x1xf32> to vector<1x2x1xf32>
    %27 = arith.maximumf %25, %26 : vector<1x2x1xf32>
    %28 = vector.extract_strided_slice %16 {offsets = [6, 0, 0], sizes = [1, 2, 1], strides = [1, 1, 1]} : vector<8x2x1xf32> to vector<1x2x1xf32>
    %29 = arith.maximumf %27, %28 : vector<1x2x1xf32>
    %30 = vector.extract_strided_slice %16 {offsets = [7, 0, 0], sizes = [1, 2, 1], strides = [1, 1, 1]} : vector<8x2x1xf32> to vector<1x2x1xf32>
    %31 = arith.maximumf %29, %30 : vector<1x2x1xf32>
    %32 = vector.broadcast %31 : vector<1x2x1xf32> to vector<8x2x1xf32>
    %33 = arith.subf %16, %32 : vector<8x2x1xf32>
    %34 = math.exp %33 : vector<8x2x1xf32>
    %35 = vector.extract_strided_slice %34 {offsets = [0, 0, 0], sizes = [1, 2, 1], strides = [1, 1, 1]} : vector<8x2x1xf32> to vector<1x2x1xf32>
    %36 = vector.extract_strided_slice %34 {offsets = [1, 0, 0], sizes = [1, 2, 1], strides = [1, 1, 1]} : vector<8x2x1xf32> to vector<1x2x1xf32>
    %37 = arith.addf %35, %36 : vector<1x2x1xf32>
    %38 = vector.extract_strided_slice %34 {offsets = [2, 0, 0], sizes = [1, 2, 1], strides = [1, 1, 1]} : vector<8x2x1xf32> to vector<1x2x1xf32>
    %39 = arith.addf %37, %38 : vector<1x2x1xf32>
    %40 = vector.extract_strided_slice %34 {offsets = [3, 0, 0], sizes = [1, 2, 1], strides = [1, 1, 1]} : vector<8x2x1xf32> to vector<1x2x1xf32>
    %41 = arith.addf %39, %40 : vector<1x2x1xf32>
    %42 = vector.extract_strided_slice %34 {offsets = [4, 0, 0], sizes = [1, 2, 1], strides = [1, 1, 1]} : vector<8x2x1xf32> to vector<1x2x1xf32>
    %43 = arith.addf %41, %42 : vector<1x2x1xf32>
    %44 = vector.extract_strided_slice %34 {offsets = [5, 0, 0], sizes = [1, 2, 1], strides = [1, 1, 1]} : vector<8x2x1xf32> to vector<1x2x1xf32>
    %45 = arith.addf %43, %44 : vector<1x2x1xf32>
    %46 = vector.extract_strided_slice %34 {offsets = [6, 0, 0], sizes = [1, 2, 1], strides = [1, 1, 1]} : vector<8x2x1xf32> to vector<1x2x1xf32>
    %47 = arith.addf %45, %46 : vector<1x2x1xf32>
    %48 = vector.extract_strided_slice %34 {offsets = [7, 0, 0], sizes = [1, 2, 1], strides = [1, 1, 1]} : vector<8x2x1xf32> to vector<1x2x1xf32>
    %49 = arith.addf %47, %48 : vector<1x2x1xf32>
    %50 = vector.broadcast %49 : vector<1x2x1xf32> to vector<8x2x1xf32>
    %51 = arith.divf %34, %50 : vector<8x2x1xf32>
    %c0_11 = arith.constant 0 : index
    %c0_12 = arith.constant 0 : index
    %c0_13 = arith.constant 0 : index
    %52 = vector.load %arg5[%c0_11, %c0_12, %c0_13] : memref<8x2x1xf32, #tpu.memory_space<vmem>>, vector<8x2x1xf32>
    tpu.vector_store %arg5[%c0_11, %c0_12, %c0_13], %51 {strides = array<i32>} : memref<8x2x1xf32, #tpu.memory_space<vmem>>, vector<8x2x1xf32>,
    return
  }
}

</mosaic_0001>

<llo_original>
// kernel: attention_forward.2
$region0: #{attention_forward.2}
  #allocation0 [shape = 'u32[]', space=smem, size = 0x4, offset = 0x4, fixed_abs, tag = 'smem constant byte address 0x4 - core index']
  #allocation1 [shape = 'u32[144,128]{1,0:T(1,128)}', space=vmem, size = 0x12000, scoped, tag = 'internal scratch']
  %s0 = inlined_call_operand.vmem [shape: bf16[16,32], index: 0, kind: input, shape index: {}]
  %s1 = inlined_call_operand.vmem [shape: bf16[32,32], index: 1, kind: input, shape index: {}]
  %s2 = inlined_call_operand.vmem [shape: f32[16,32], index: 2, kind: output, shape index: {}]
  %s3 = sld [smem:[#allocation0]]
  $region18: #{attention_forward.2} parent=0
    _
  %s5 = ssub.s32 1, %s3
  %s6 = scalar_select 0, %s5, %s3
  // Predicated region
  $region2: #{attention_forward.2} parent=0 // pred_check
    _
  $region3: #{attention_forward.2} parent=0 // pred_check_branch
    %8 = sbr.rel (0) target = $region5
  $region4: #{attention_forward.2} parent=0 // pred_region
    _
  $region5: #{attention_forward.2} parent=0 // pred_fallthru
    _
  // Predicated region
  $region6: #{attention_forward.2} parent=0 // pred_check
    _
  $region7: #{attention_forward.2} parent=0 // pred_check_branch
    %10 = sbr.rel (0) target = $region9
  $region8: #{attention_forward.2} parent=0 // pred_region
    _
  $region9: #{attention_forward.2} parent=0 // pred_fallthru
    _
  %v12 = vld [vmem:[%s0] sm:$0xf]
  %v13 = vld [vmem:[%s0 + $0x4] sm:$0xf]
  %v14 = vld [vmem:[%s1] sm:$0xf]
  %v15 = vld [vmem:[%s1 + $0x4] sm:$0xf]
  %v16 = vld [vmem:[%s1 + $0x8] sm:$0xf]
  %v17 = vld [vmem:[%s1 + $0xc] sm:$0xf]
  %v20 = vunpack.c.l.b16 %v12
  %v21 = vunpack.c.l.b16 %v13
  %v22 = vpack.c.b16 %v21, %v20
  %v27 = vunpack.c.l.b16 %v14
  %v28 = vunpack.c.l.b16 %v15
  %v29 = vunpack.c.l.b16 %v16
  %v30 = vunpack.c.l.b16 %v17
  %v31 = vpack.c.b16 %v28, %v27
  %v32 = vpack.c.b16 %v30, %v29
  %vm35 = vcmask 261120
  %v37 = vsel %vm35, %v22, 0
  %39 = vmatprep.subr.bf16.mxu0 0
  %40 = vmatpush1.bf16.msra.mxu0 0
  %41 = vmatprep.subr.bf16.mxu0 0
  %42 = vmatpush1.bf16.msra.mxu0 0
  %43 = vmatprep.subr.bf16.mxu0 0
  %44 = vmatpush1.bf16.msra.mxu0 0
  %45 = vmatprep.subr.bf16.mxu0 0
  %46 = vmatpush1.bf16.msra.mxu0 0
  %47 = vmatprep.subr.bf16.mxu0 0
  %48 = vmatpush1.bf16.msra.mxu0 0
  %49 = vmatprep.subr.bf16.mxu0 0
  %50 = vmatpush1.bf16.msra.mxu0 0
  %51 = vmatprep.subr.bf16.mxu0 0
  %52 = vmatpush1.bf16.msra.mxu0 %v32
  %53 = vmatprep.subr.bf16.mxu0 0
  %54 = vmatpush1.bf16.msra.mxu0 %v31
  %55 = vmatprep.subr.bf16.mxu0 0
  %56 = vmatpush2.bf16.msra.mxu0 0
  %57 = vmatprep.subr.bf16.mxu0 0
  %58 = vmatpush2.bf16.msra.mxu0 0
  %59 = vmatprep.subr.bf16.mxu0 0
  %60 = vmatpush2.bf16.msra.mxu0 0
  %61 = vmatprep.subr.bf16.mxu0 0
  %62 = vmatpush2.bf16.msra.mxu0 0
  %63 = vmatprep.subr.bf16.mxu0 0
  %64 = vmatpush2.bf16.msra.mxu0 0
  %65 = vmatprep.subr.bf16.mxu0 0
  %66 = vmatpush2.bf16.msra.mxu0 0
  %67 = vmatprep.subr.bf16.mxu0 0
  %68 = vmatpush2.bf16.msra.mxu0 0
  %69 = vmatprep.subr.bf16.mxu0 0
  %70 = vmatpush2.bf16.msra.mxu0 0
  %71 = vmatprep.mubr.bf16.mxu0 0
  %72 = vmatmul.mubr.bf16.gmra.mxu0 %v37
  %v73 = vpop.f32.mrf.mxu0
  %v74 = vadd.f32 0.0, %v73
  %v75 = vpop.f32.mrf.mxu0
  %v76 = vpop.f32.mrf.mxu0
  %v77 = vadd.f32 0.0, %v76
  %v78 = vpop.f32.mrf.mxu0
  %79 = vdwg.mxu0
  %80 = vst.msk [vmem:[%s2] sm:$0xff] %vm35, %v74
  %81 = vst.msk [vmem:[%s2 + $0x8] sm:$0xff] %vm35, %v77
  // Predicated region
  $region10: #{attention_forward.2} parent=0 // pred_check
    _
  $region11: #{attention_forward.2} parent=0 // pred_check_branch
    %83 = sbr.rel (0) target = $region13
  $region12: #{attention_forward.2} parent=0 // pred_region
    _
  $region13: #{attention_forward.2} parent=0 // pred_fallthru
    _
  // Predicated region
  $region14: #{attention_forward.2} parent=0 // pred_check
    _
  $region15: #{attention_forward.2} parent=0 // pred_check_branch
    %85 = sbr.rel (0) target = $region17
  $region16: #{attention_forward.2} parent=0 // pred_region
    _
  $region17: #{attention_forward.2} parent=0 // pred_fallthru
    _

// kernel: attention_forward.3
$region0: #{attention_forward.3}
  #allocation0 [shape = 'u32[]', space=smem, size = 0x4, offset = 0x4, fixed_abs, tag = 'smem constant byte address 0x4 - core index']
  #allocation1 [shape = 'u32[144,128]{1,0:T(1,128)}', space=vmem, size = 0x12000, scoped, tag = 'internal scratch']
  %s0 = inlined_call_operand.vmem [shape: bf16[2,32], index: 0, kind: input, shape index: {}]
  %s1 = inlined_call_operand.vmem [shape: f32[8,2,32], index: 1, kind: input, shape index: {}]
  %s2 = inlined_call_operand.vmem [shape: bf16[32,32], index: 2, kind: input, shape index: {}]
  %s3 = inlined_call_operand.vmem [shape: f32[1,32], index: 3, kind: input, shape index: {}]
  %s4 = inlined_call_operand.vmem [shape: f32[1,32], index: 4, kind: input, shape index: {}]
  %s5 = inlined_call_operand.vmem [shape: f32[8,2,1], index: 5, kind: output, shape index: {}]
  %s6 = sld [smem:[#allocation0]]
  $region30: #{attention_forward.3} parent=0
    _
  %s8 = ssub.s32 1, %s6
  %s9 = scalar_select 0, %s8, %s6
  // Predicated region
  $region2: #{attention_forward.3} parent=0 // pred_check
    _
  $region3: #{attention_forward.3} parent=0 // pred_check_branch
    %11 = sbr.rel (0) target = $region5
  $region4: #{attention_forward.3} parent=0 // pred_region
    _
  $region5: #{attention_forward.3} parent=0 // pred_fallthru
    _
  // Predicated region
  $region6: #{attention_forward.3} parent=0 // pred_check
    _
  $region7: #{attention_forward.3} parent=0 // pred_check_branch
    %13 = sbr.rel (0) target = $region9
  $region8: #{attention_forward.3} parent=0 // pred_region
    _
  $region9: #{attention_forward.3} parent=0 // pred_fallthru
    _
  // Predicated region
  $region10: #{attention_forward.3} parent=0 // pred_check
    _
  $region11: #{attention_forward.3} parent=0 // pred_check_branch
    %15 = sbr.rel (0) target = $region13
  $region12: #{attention_forward.3} parent=0 // pred_region
    _
  $region13: #{attention_forward.3} parent=0 // pred_fallthru
    _
  // Predicated region
  $region14: #{attention_forward.3} parent=0 // pred_check
    _
  $region15: #{attention_forward.3} parent=0 // pred_check_branch
    %17 = sbr.rel (0) target = $region17
  $region16: #{attention_forward.3} parent=0 // pred_region
    _
  $region17: #{attention_forward.3} parent=0 // pred_fallthru
    _
  // Predicated region
  $region18: #{attention_forward.3} parent=0 // pred_check
    _
  $region19: #{attention_forward.3} parent=0 // pred_check_branch
    %19 = sbr.rel (0) target = $region21
  $region20: #{attention_forward.3} parent=0 // pred_region
    _
  $region21: #{attention_forward.3} parent=0 // pred_fallthru
    _
  %v21 = vld [vmem:[%s0] sm:$0x1]
  %v22 = vld [vmem:[%s2] sm:$0xf]
  %v23 = vld [vmem:[%s2 + $0x4] sm:$0xf]
  %v24 = vld [vmem:[%s2 + $0x8] sm:$0xf]
  %v25 = vld [vmem:[%s2 + $0xc] sm:$0xf]
  %v26 = vld [vmem:[%s3] sm:$0x1]
  %v28 = vlaneseq
  %v29 = vshrl.u32 %v28, 7
  %v30 = vsub.s32 0, %v29
  %v31 = vrot.slane %v26, %v30
  %v37 = vunpack.c.l.b16 %v22
  %v38 = vunpack.c.l.b16 %v23
  %v39 = vunpack.c.l.b16 %v24
  %v40 = vunpack.c.l.b16 %v25
  %v41 = vpack.c.b16 %v38, %v37
  %v42 = vpack.c.b16 %v40, %v39
  %vm45 = vcmask 261120
  %v47 = vsel %vm45, %v21, 0
  %49 = vmatprep.subr.bf16.mxu0 0
  %50 = vmatpush1.bf16.msra.mxu0 0
  %51 = vmatprep.subr.bf16.mxu0 0
  %52 = vmatpush1.bf16.msra.mxu0 0
  %53 = vmatprep.subr.bf16.mxu0 0
  %54 = vmatpush1.bf16.msra.mxu0 0
  %55 = vmatprep.subr.bf16.mxu0 0
  %56 = vmatpush1.bf16.msra.mxu0 0
  %57 = vmatprep.subr.bf16.mxu0 0
  %58 = vmatpush1.bf16.msra.mxu0 0
  %59 = vmatprep.subr.bf16.mxu0 0
  %60 = vmatpush1.bf16.msra.mxu0 0
  %61 = vmatprep.subr.bf16.mxu0 0
  %62 = vmatpush1.bf16.msra.mxu0 %v42
  %63 = vmatprep.subr.bf16.mxu0 0
  %64 = vmatpush1.bf16.msra.mxu0 %v41
  %65 = vmatprep.subr.bf16.mxu0 0
  %66 = vmatpush2.bf16.msra.mxu0 0
  %67 = vmatprep.subr.bf16.mxu0 0
  %68 = vmatpush2.bf16.msra.mxu0 0
  %69 = vmatprep.subr.bf16.mxu0 0
  %70 = vmatpush2.bf16.msra.mxu0 0
  %71 = vmatprep.subr.bf16.mxu0 0
  %72 = vmatpush2.bf16.msra.mxu0 0
  %73 = vmatprep.subr.bf16.mxu0 0
  %74 = vmatpush2.bf16.msra.mxu0 0
  %75 = vmatprep.subr.bf16.mxu0 0
  %76 = vmatpush2.bf16.msra.mxu0 0
  %77 = vmatprep.subr.bf16.mxu0 0
  %78 = vmatpush2.bf16.msra.mxu0 0
  %79 = vmatprep.subr.bf16.mxu0 0
  %80 = vmatpush2.bf16.msra.mxu0 0
  %81 = vmatprep.mubr.bf16.mxu0 0
  %82 = vmatmul.mubr.bf16.gmra.mxu0 %v47
  %v83 = vpop.f32.mrf.mxu0
  %v84 = vadd.f32 %v31, %v83
  %v85 = vpop.f32.mrf.mxu0
  %v86 = vpop.f32.mrf.mxu0
  %v87 = vpop.f32.mrf.mxu0
  %88 = vdwg.mxu0
  %v89 = vld [vmem:[%s1] sm:$0x3]
  %v90 = vld [vmem:[%s1 + $0x2] sm:$0x3]
  %v91 = vld [vmem:[%s1 + $0x4] sm:$0x3]
  %v92 = vld [vmem:[%s1 + $0x6] sm:$0x3]
  %v93 = vld [vmem:[%s1 + $0x8] sm:$0x3]
  %v94 = vld [vmem:[%s1 + $0xa] sm:$0x3]
  %v95 = vld [vmem:[%s1 + $0xc] sm:$0x3]
  %v96 = vld [vmem:[%s1 + $0xe] sm:$0x3]
  %v97 = vadd.f32 %v89, %v84
  %v98 = vadd.f32 %v90, %v84
  %v99 = vadd.f32 %v91, %v84
  %v100 = vadd.f32 %v92, %v84
  %v101 = vadd.f32 %v93, %v84
  %v102 = vadd.f32 %v94, %v84
  %v103 = vadd.f32 %v95, %v84
  %v104 = vadd.f32 %v96, %v84
  %v105 = vtanh.pop %v97
  %v106 = vtanh.pop %v98
  %v107 = vtanh.pop %v99
  %v108 = vtanh.pop %v100
  %v109 = vtanh.pop %v101
  %v110 = vtanh.pop %v102
  %v111 = vtanh.pop %v103
  %v112 = vtanh.pop %v104
  %v113 = vld [vmem:[%s4] sm:$0x1]
  %v115 = vlaneseq
  %v116 = vshrl.u32 %v115, 7
  %v117 = vsub.s32 0, %v116
  %v118 = vrot.slane %v113, %v117
  %v120 = vmul.f32 %v105, %v118
  %v121 = vmul.f32 %v106, %v118
  %v122 = vmul.f32 %v107, %v118
  %v123 = vmul.f32 %v108, %v118
  %v124 = vmul.f32 %v109, %v118
  %v125 = vmul.f32 %v110, %v118
  %v126 = vmul.f32 %v111, %v118
  %v127 = vmul.f32 %v112, %v118
  %vm128 = vcmask 254976
  %v129 = vsel %vm128, %v120, 0.0
  %130 = vadd.xlane.f32.xlu0 %v129
  %v131 = vpop.xlane.xlu0 %130
  %v132 = vsel %vm128, %v121, 0.0
  %133 = vadd.xlane.f32.xlu0 %v132
  %v134 = vpop.xlane.xlu0 %133
  %v135 = vsel %vm128, %v122, 0.0
  %136 = vadd.xlane.f32.xlu0 %v135
  %v137 = vpop.xlane.xlu0 %136
  %v138 = vsel %vm128, %v123, 0.0
  %139 = vadd.xlane.f32.xlu0 %v138
  %v140 = vpop.xlane.xlu0 %139
  %v141 = vsel %vm128, %v124, 0.0
  %142 = vadd.xlane.f32.xlu0 %v141
  %v143 = vpop.xlane.xlu0 %142
  %v144 = vsel %vm128, %v125, 0.0
  %145 = vadd.xlane.f32.xlu0 %v144
  %v146 = vpop.xlane.xlu0 %145
  %v147 = vsel %vm128, %v126, 0.0
  %148 = vadd.xlane.f32.xlu0 %v147
  %v149 = vpop.xlane.xlu0 %148
  %v150 = vsel %vm128, %v127, 0.0
  %151 = vadd.xlane.f32.xlu0 %v150
  %v152 = vpop.xlane.xlu0 %151
  %v153 = vmax.f32 %v131, %v134
  %v154 = vmax.f32 %v153, %v137
  %v155 = vmax.f32 %v154, %v140
  %v156 = vmax.f32 %v155, %v143
  %v157 = vmax.f32 %v156, %v146
  %v158 = vmax.f32 %v157, %v149
  %v159 = vmax.f32 %v158, %v152
  %v160 = vsub.f32 %v131, %v159
  %v161 = vsub.f32 %v134, %v159
  %v162 = vsub.f32 %v137, %v159
  %v163 = vsub.f32 %v140, %v159
  %v164 = vsub.f32 %v143, %v159
  %v165 = vsub.f32 %v146, %v159
  %v166 = vsub.f32 %v149, %v159
  %v167 = vsub.f32 %v152, %v159
  %v168 = vmul.f32 %v160, 1.442695
  %v169 = vpow.pop %v168
  %v170 = vmul.f32 %v161, 1.442695
  %v171 = vpow.pop %v170
  %v172 = vmul.f32 %v162, 1.442695
  %v173 = vpow.pop %v172
  %v174 = vmul.f32 %v163, 1.442695
  %v175 = vpow.pop %v174
  %v176 = vmul.f32 %v164, 1.442695
  %v177 = vpow.pop %v176
  %v178 = vmul.f32 %v165, 1.442695
  %v179 = vpow.pop %v178
  %v180 = vmul.f32 %v166, 1.442695
  %v181 = vpow.pop %v180
  %v182 = vmul.f32 %v167, 1.442695
  %v183 = vpow.pop %v182
  %v184 = vadd.f32 %v169, %v171
  %v185 = vadd.f32 %v184, %v173
  %v186 = vadd.f32 %v185, %v175
  %v187 = vadd.f32 %v186, %v177
  %v188 = vadd.f32 %v187, %v179
  %v189 = vadd.f32 %v188, %v181
  %v190 = vadd.f32 %v189, %v183
  %v191 = vrcp.pop %v190
  %v192 = vmul.f32 %v169, %v191
  %v193 = vmul.f32 %v171, %v191
  %v194 = vmul.f32 %v173, %v191
  %v195 = vmul.f32 %v175, %v191
  %v196 = vmul.f32 %v177, %v191
  %v197 = vmul.f32 %v179, %v191
  %v198 = vmul.f32 %v181, %v191
  %v199 = vmul.f32 %v183, %v191
  %vm200 = vcmask 1024
  %201 = vst.msk [vmem:[%s5] sm:$0x3] %vm200, %v192
  %202 = vst.msk [vmem:[%s5 + $0x2] sm:$0x3] %vm200, %v193
  %203 = vst.msk [vmem:[%s5 + $0x4] sm:$0x3] %vm200, %v194
  %204 = vst.msk [vmem:[%s5 + $0x6] sm:$0x3] %vm200, %v195
  %205 = vst.msk [vmem:[%s5 + $0x8] sm:$0x3] %vm200, %v196
  %206 = vst.msk [vmem:[%s5 + $0xa] sm:$0x3] %vm200, %v197
  %207 = vst.msk [vmem:[%s5 + $0xc] sm:$0x3] %vm200, %v198
  %208 = vst.msk [vmem:[%s5 + $0xe] sm:$0x3] %vm200, %v199
  // Predicated region
  $region22: #{attention_forward.3} parent=0 // pred_check
    _
  $region23: #{attention_forward.3} parent=0 // pred_check_branch
    %210 = sbr.rel (0) target = $region25
  $region24: #{attention_forward.3} parent=0 // pred_region
    _
  $region25: #{attention_forward.3} parent=0 // pred_fallthru
    _
  // Predicated region
  $region26: #{attention_forward.3} parent=0 // pred_check
    _
  $region27: #{attention_forward.3} parent=0 // pred_check_branch
    %212 = sbr.rel (0) target = $region29
  $region28: #{attention_forward.3} parent=0 // pred_region
    _
  $region29: #{attention_forward.3} parent=0 // pred_fallthru
    _

</llo_original>
